<compile_context>
chip_gen: v6e
topology: v6e:2x2x1
jax: 0.10.0
libtpu: 0.0.40
codegen_flags: <defaults>
</compile_context>

<pallas_src>
import functools

import numpy as np

import jax
import jax.numpy as jnp
from jax.experimental import pallas as pl
from jax.experimental.pallas import tpu as pltpu


def _round_up(x, m):
    return -(-x // m) * m


def _sublane_pack(dtype):
    # rows per packed sublane tile: 8 for 4-byte, 16 for 2-byte, 32 for 1-byte
    return max(8, 32 // max(1, jnp.dtype(dtype).itemsize))


def _vmem_capacity_bytes():
    """Best-effort per-core VMEM capacity; conservative fallback (v7x)."""
    try:
        info = pltpu.get_tpu_info()
        for attr in ("vmem_capacity_bytes", "vmem_size_bytes", "vmem_bytes"):
            v = getattr(info, attr, None)
            if v:
                return int(v)
    except Exception:
        pass
    return 64 << 20


def _build_masks(K, dilate, H, W, HW_pad):
    """(K*K, HW_pad) int32 validity masks, one row per modulo-shift index k."""
    KK = K * K
    half = K // 2
    f = np.arange(HW_pad)
    h_idx = f // W
    w_idx = f % W
    in_plane = f < (H * W)
    masks = np.zeros((KK, HW_pad), dtype=np.int32)
    for k in range(KK):
        dh = dilate * ((k // K) - half)
        dw = dilate * ((k % K) - half)
        valid = (in_plane
                 & (h_idx + dh >= 0) & (h_idx + dh < H)
                 & (w_idx + dw >= 0) & (w_idx + dw < W))
        masks[k] = valid
    return jnp.asarray(masks)


def _generic_shift_kernel(mask_ref, x_ref, o_ref, *, K, dilate, W, HW_pad,
                          split_k):
    """x/o block: (1, g_blk, lane_block); mask block: (K*K, HW_pad).

    Lane range [k*HW_pad, (k+1)*HW_pad) of every channel group holds the
    channel whose modulo-shift index is k, so each k has a static (dh, dw).
    """
    KK = K * K
    half = K // 2
    zero = jnp.array(0, dtype=o_ref.dtype)

    def emit(k, lane_start):
        dh = dilate * ((k // K) - half)
        dw = dilate * ((k % K) - half)
        # dst[h, w] = src[h+dh, w+dw]  <=>  rotate the flat (padded) plane by
        # -(dh*W+dw); wrapped positions are exactly the masked ones.
        amt = (-(dh * W + dw)) % HW_pad          # normalized for pltpu.roll
        x_k = x_ref[0, :, pl.ds(lane_start, HW_pad)]     # (g_blk, HW_pad)
        if amt:
            x_k = pltpu.roll(x_k, amt, axis=1)            # XLU lane rotation
        m_k = mask_ref[pl.ds(k, 1), :]                    # (1, HW_pad)
        o_ref[0, :, pl.ds(lane_start, HW_pad)] = jnp.where(m_k != 0, x_k, zero)

    if split_k:
        # One k per grid step along axis 2; keep the shift static per branch.
        kt = pl.program_id(2)
        for k in range(KK):
            @pl.when(kt == k)
            def _(k=k):
                emit(k, 0)
    else:
        for k in range(KK):
            emit(k, k * HW_pad)


def generic_shift(x, kernel_size, dilate_factor=1, *, _force_split_k=None):
    """Pallas TPU implementation of GenericShift_cuda.forward (NCHW)."""
    N, C, H, W = x.shape
    K = int(kernel_size)
    d = int(dilate_factor)
    KK = K * K
    HW = H * W
    HW_pad = _round_up(HW, 128)
    G = pl.cdiv(C, KK)
    C_pad = G * KK
    itemsize = jnp.dtype(x.dtype).itemsize
    pack = _sublane_pack(x.dtype)

    # Single pad pass handles both ragged channel groups and lane alignment.
    xf = x.reshape(N, C, HW)
    padded = (C_pad != C) or (HW_pad != HW)
    if padded:
        xf = jnp.pad(xf, ((0, 0), (0, C_pad - C), (0, HW_pad - HW)))
    xf = xf.reshape(N, G, KK * HW_pad)

    masks = _build_masks(K, d, H, W, HW_pad)

    # Generation-aware block sizing.
    vmem_cap = _vmem_capacity_bytes()
    if vmem_cap >= (100 << 20):        # v5e / v6e: 128 MiB physical VMEM
        target_bytes, vmem_limit_cap = 8 << 20, 96 << 20
    else:                              # v7x: 64 MiB per TensorCore
        target_bytes, vmem_limit_cap = 4 << 20, 48 << 20

    per_group = KK * HW_pad * itemsize
    split_k = per_group > target_bytes          # one group too big -> split k
    if _force_split_k is not None:
        split_k = bool(_force_split_k)

    lane_block = HW_pad if split_k else KK * HW_pad
    per_row = lane_block * itemsize
    k_steps = KK if split_k else 1

    # Legal sublane block sizes: full extent G, or multiples of the packing.
    legal = sorted({G} | set(range(pack, G + 1, pack)))
    fits = [v for v in legal if v * per_row <= target_bytes]
    g_blk = fits[-1] if fits else legal[0]

    def n_steps(gb):
        return N * pl.cdiv(G, gb) * k_steps

    # Guarantee enough grid steps for pipelining / both v7x TensorCores.
    if n_steps(g_blk) < 4:
        enough = [v for v in legal if n_steps(v) >= 4]
        if enough:
            g_blk = min(g_blk, enough[-1])

    block_bytes = _round_up(g_blk, pack) * lane_block * itemsize
    mask_bytes = KK * HW_pad * 4
    vmem_limit = int(min(max(32 << 20,
                             4 * block_bytes + 2 * mask_bytes + (4 << 20)),
                         vmem_limit_cap))

    if split_k:
        x_map = lambda n, g, j: (n, g, j)
    else:
        x_map = lambda n, g, j: (n, g, 0)

    kernel = functools.partial(_generic_shift_kernel, K=K, dilate=d, W=W,
                               HW_pad=HW_pad, split_k=split_k)

    bytes_accessed = 2 * N * G * KK * HW_pad * itemsize + mask_bytes

    out = pl.pallas_call(
        kernel,
        out_shape=jax.ShapeDtypeStruct((N, G, KK * HW_pad), x.dtype),
        grid_spec=pltpu.PrefetchScalarGridSpec(
            num_scalar_prefetch=0,
            grid=(N, pl.cdiv(G, g_blk), k_steps),
            in_specs=[
                pl.BlockSpec((KK, HW_pad), lambda n, g, j: (0, 0)),     # masks
                pl.BlockSpec((1, g_blk, lane_block), x_map),            # x
            ],
            out_specs=pl.BlockSpec((1, g_blk, lane_block), x_map),
        ),
        compiler_params=pltpu.CompilerParams(
            dimension_semantics=("parallel", "parallel", "parallel"),
            vmem_limit_bytes=vmem_limit,
        ),
        cost_estimate=pl.CostEstimate(flops=0, transcendentals=0,
                                      bytes_accessed=int(bytes_accessed)),
    )(masks, xf)

    out = out.reshape(N, C_pad, HW_pad)
    if padded:
        out = out[:, :C, :HW]
    return out.reshape(N, C, H, W)


def generic_shift_reference(x, kernel_size, dilate_factor=1):
    """Pure-JAX reference for correctness checking."""
    N, C, H, W = x.shape
    K = int(kernel_size)
    KK = K * K
    half = K // 2
    h_idx = jnp.arange(H)[:, None]
    w_idx = jnp.arange(W)[None, :]
    chans = []
    for c in range(C):
        k = c % KK
        dh = dilate_factor * ((k // K) - half)
        dw = dilate_factor * ((k % K) - half)
        shifted = jnp.roll(x[:, c], shift=(-dh, -dw), axis=(1, 2))
        valid = (
            ((h_idx + dh) >= 0) & ((h_idx + dh) < H)
            & ((w_idx + dw) >= 0) & ((w_idx + dw) < W)
        )
        chans.append(jnp.where(valid[None], shifted, 0.0))
    return jnp.stack(chans, axis=1)


if __name__ == "__main__":
    key = jax.random.PRNGKey(0)
    # (shape, kernel_size, dilate_factor, force_split_k)
    tests = [
        ((2, 18, 16, 16), 3, 1, None),   # C multiple of K*K, HW already aligned
        ((2, 4, 16, 16), 3, 2, None),    # ragged C (< K*K) + dilation
        ((1, 25, 8, 24), 5, 1, None),    # 5x5 kernel, HW=192 -> lane padding
        ((1, 18, 16, 16), 3, 1, True),   # exercise the per-k grid-split path
    ]
    for i, (shape, ks, dil, force) in enumerate(tests):
        key, sub = jax.random.split(key)
        x = jax.random.normal(sub, shape, dtype=jnp.float32)
        out = jax.block_until_ready(
            generic_shift(x, ks, dil, _force_split_k=force))
        ref = generic_shift_reference(x, ks, dil)
        assert out.shape == x.shape, f"test {i}: bad shape {out.shape}"
        assert out.dtype == x.dtype, f"test {i}: bad dtype {out.dtype}"
        assert jnp.allclose(out, ref, atol=1e-6, rtol=0.0), f"test {i}: mismatch"
    print("KERNEL_OK")
</pallas_src>

<mosaic_0001>
module attributes {stable_mosaic.version = 11 : i64} {
  func.func @_generic_shift_kernel(%arg0: i32, %arg1: i32, %arg2: i32, %arg3: memref<9x256xi32, #tpu.memory_space<vmem>>, %arg4: memref<1x2x2304xf32, #tpu.memory_space<vmem>>, %arg5: memref<1x2x2304xf32, #tpu.memory_space<vmem>>) attributes {dimension_semantics = [#tpu.dimension_semantics<parallel>, #tpu.dimension_semantics<parallel>, #tpu.dimension_semantics<parallel>], iteration_bounds = array<i64: 2, 1, 1>, scalar_prefetch = 0 : i64, scratch_operands = 0 : i64, tpu.core_type = #tpu.core_type<tc>, window_params = [{pipeline_mode = #tpu.pipeline_mode<synchronous>, transform_indices = @transform_0, window_bounds = array<i64: 9, 256>}, {transform_indices = @transform_1, window_bounds = array<i64: 1, 2, 2304>}, {transform_indices = @transform_2, window_bounds = array<i64: 1, 2, 2304>}]} {
    %c0 = arith.constant 0 : index
    %c0_0 = arith.constant 0 : index
    %c0_1 = arith.constant 0 : index
    %0 = vector.load %arg4[%c0, %c0_0, %c0_1] : memref<1x2x2304xf32, #tpu.memory_space<vmem>>, vector<1x2x256xf32>
    %1 = vector.shape_cast %0 : vector<1x2x256xf32> to vector<2x256xf32>
    %c17_i32 = arith.constant 17 : i32
    %2 = tpu.dynamic_rotate %1 by %c17_i32 dim 1 : vector<2x256xf32>, i32 -> vector<2x256xf32>
    %c0_2 = arith.constant 0 : index
    %c0_3 = arith.constant 0 : index
    %3 = vector.load %arg3[%c0_2, %c0_3] : memref<9x256xi32, #tpu.memory_space<vmem>>, vector<1x256xi32>
    %c0_i32 = arith.constant 0 : i32
    %4 = vector.broadcast %c0_i32 : i32 to vector<1x256xi32>
    %5 = arith.cmpi ne, %3, %4 : vector<1x256xi32>
    %cst = arith.constant 0.000000e+00 : f32
    %6 = vector.shape_cast %5 : vector<1x256xi1> to vector<1x256xi1>
    %7 = vector.broadcast %6 : vector<1x256xi1> to vector<2x256xi1>
    %8 = vector.broadcast %cst : f32 to vector<2x256xf32>
    %9 = arith.select %7, %2, %8 : vector<2x256xi1>, vector<2x256xf32>
    %c0_4 = arith.constant 0 : index
    %c0_5 = arith.constant 0 : index
    %c0_6 = arith.constant 0 : index
    %10 = vector.load %arg5[%c0_4, %c0_5, %c0_6] : memref<1x2x2304xf32, #tpu.memory_space<vmem>>, vector<1x2x256xf32>
    %11 = vector.shape_cast %10 : vector<1x2x256xf32> to vector<2x256xf32>
    %12 = vector.shape_cast %9 : vector<2x256xf32> to vector<1x2x256xf32>
    tpu.vector_store %arg5[%c0_4, %c0_5, %c0_6], %12 {strides = array<i32>} : memref<1x2x2304xf32, #tpu.memory_space<vmem>>, vector<1x2x256xf32>,
    %c0_7 = arith.constant 0 : index
    %c0_8 = arith.constant 0 : index
    %c256 = arith.constant 256 : index
    %13 = vector.load %arg4[%c0_7, %c0_8, %c256] : memref<1x2x2304xf32, #tpu.memory_space<vmem>>, vector<1x2x256xf32>
    %14 = vector.shape_cast %13 : vector<1x2x256xf32> to vector<2x256xf32>
    %c16_i32 = arith.constant 16 : i32
    %15 = tpu.dynamic_rotate %14 by %c16_i32 dim 1 : vector<2x256xf32>, i32 -> vector<2x256xf32>
    %c1 = arith.constant 1 : index
    %c0_9 = arith.constant 0 : index
    %16 = vector.load %arg3[%c1, %c0_9] : memref<9x256xi32, #tpu.memory_space<vmem>>, vector<1x256xi32>
    %c0_i32_10 = arith.constant 0 : i32
    %17 = vector.broadcast %c0_i32_10 : i32 to vector<1x256xi32>
    %18 = arith.cmpi ne, %16, %17 : vector<1x256xi32>
    %cst_11 = arith.constant 0.000000e+00 : f32
    %19 = vector.shape_cast %18 : vector<1x256xi1> to vector<1x256xi1>
    %20 = vector.broadcast %19 : vector<1x256xi1> to vector<2x256xi1>
    %21 = vector.broadcast %cst_11 : f32 to vector<2x256xf32>
    %22 = arith.select %20, %15, %21 : vector<2x256xi1>, vector<2x256xf32>
    %c0_12 = arith.constant 0 : index
    %c0_13 = arith.constant 0 : index
    %c256_14 = arith.constant 256 : index
    %23 = vector.load %arg5[%c0_12, %c0_13, %c256_14] : memref<1x2x2304xf32, #tpu.memory_space<vmem>>, vector<1x2x256xf32>
    %24 = vector.shape_cast %23 : vector<1x2x256xf32> to vector<2x256xf32>
    %25 = vector.shape_cast %22 : vector<2x256xf32> to vector<1x2x256xf32>
    tpu.vector_store %arg5[%c0_12, %c0_13, %c256_14], %25 {strides = array<i32>} : memref<1x2x2304xf32, #tpu.memory_space<vmem>>, vector<1x2x256xf32>,
    %c0_15 = arith.constant 0 : index
    %c0_16 = arith.constant 0 : index
    %c512 = arith.constant 512 : index
    %26 = vector.load %arg4[%c0_15, %c0_16, %c512] : memref<1x2x2304xf32, #tpu.memory_space<vmem>>, vector<1x2x256xf32>
    %27 = vector.shape_cast %26 : vector<1x2x256xf32> to vector<2x256xf32>
    %c15_i32 = arith.constant 15 : i32
    %28 = tpu.dynamic_rotate %27 by %c15_i32 dim 1 : vector<2x256xf32>, i32 -> vector<2x256xf32>
    %c2 = arith.constant 2 : index
    %c0_17 = arith.constant 0 : index
    %29 = vector.load %arg3[%c2, %c0_17] : memref<9x256xi32, #tpu.memory_space<vmem>>, vector<1x256xi32>
    %c0_i32_18 = arith.constant 0 : i32
    %30 = vector.broadcast %c0_i32_18 : i32 to vector<1x256xi32>
    %31 = arith.cmpi ne, %29, %30 : vector<1x256xi32>
    %cst_19 = arith.constant 0.000000e+00 : f32
    %32 = vector.shape_cast %31 : vector<1x256xi1> to vector<1x256xi1>
    %33 = vector.broadcast %32 : vector<1x256xi1> to vector<2x256xi1>
    %34 = vector.broadcast %cst_19 : f32 to vector<2x256xf32>
    %35 = arith.select %33, %28, %34 : vector<2x256xi1>, vector<2x256xf32>
    %c0_20 = arith.constant 0 : index
    %c0_21 = arith.constant 0 : index
    %c512_22 = arith.constant 512 : index
    %36 = vector.load %arg5[%c0_20, %c0_21, %c512_22] : memref<1x2x2304xf32, #tpu.memory_space<vmem>>, vector<1x2x256xf32>
    %37 = vector.shape_cast %36 : vector<1x2x256xf32> to vector<2x256xf32>
    %38 = vector.shape_cast %35 : vector<2x256xf32> to vector<1x2x256xf32>
    tpu.vector_store %arg5[%c0_20, %c0_21, %c512_22], %38 {strides = array<i32>} : memref<1x2x2304xf32, #tpu.memory_space<vmem>>, vector<1x2x256xf32>,
    %c0_23 = arith.constant 0 : index
    %c0_24 = arith.constant 0 : index
    %c768 = arith.constant 768 : index
    %39 = vector.load %arg4[%c0_23, %c0_24, %c768] : memref<1x2x2304xf32, #tpu.memory_space<vmem>>, vector<1x2x256xf32>
    %40 = vector.shape_cast %39 : vector<1x2x256xf32> to vector<2x256xf32>
    %c1_i32 = arith.constant 1 : i32
    %41 = tpu.dynamic_rotate %40 by %c1_i32 dim 1 : vector<2x256xf32>, i32 -> vector<2x256xf32>
    %c3 = arith.constant 3 : index
    %c0_25 = arith.constant 0 : index
    %42 = vector.load %arg3[%c3, %c0_25] : memref<9x256xi32, #tpu.memory_space<vmem>>, vector<1x256xi32>
    %c0_i32_26 = arith.constant 0 : i32
    %43 = vector.broadcast %c0_i32_26 : i32 to vector<1x256xi32>
    %44 = arith.cmpi ne, %42, %43 : vector<1x256xi32>
    %cst_27 = arith.constant 0.000000e+00 : f32
    %45 = vector.shape_cast %44 : vector<1x256xi1> to vector<1x256xi1>
    %46 = vector.broadcast %45 : vector<1x256xi1> to vector<2x256xi1>
    %47 = vector.broadcast %cst_27 : f32 to vector<2x256xf32>
    %48 = arith.select %46, %41, %47 : vector<2x256xi1>, vector<2x256xf32>
    %c0_28 = arith.constant 0 : index
    %c0_29 = arith.constant 0 : index
    %c768_30 = arith.constant 768 : index
    %49 = vector.load %arg5[%c0_28, %c0_29, %c768_30] : memref<1x2x2304xf32, #tpu.memory_space<vmem>>, vector<1x2x256xf32>
    %50 = vector.shape_cast %49 : vector<1x2x256xf32> to vector<2x256xf32>
    %51 = vector.shape_cast %48 : vector<2x256xf32> to vector<1x2x256xf32>
    tpu.vector_store %arg5[%c0_28, %c0_29, %c768_30], %51 {strides = array<i32>} : memref<1x2x2304xf32, #tpu.memory_space<vmem>>, vector<1x2x256xf32>,
    %c0_31 = arith.constant 0 : index
    %c0_32 = arith.constant 0 : index
    %c1024 = arith.constant 1024 : index
    %52 = vector.load %arg4[%c0_31, %c0_32, %c1024] : memref<1x2x2304xf32, #tpu.memory_space<vmem>>, vector<1x2x256xf32>
    %53 = vector.shape_cast %52 : vector<1x2x256xf32> to vector<2x256xf32>
    %c4 = arith.constant 4 : index
    %c0_33 = arith.constant 0 : index
    %54 = vector.load %arg3[%c4, %c0_33] : memref<9x256xi32, #tpu.memory_space<vmem>>, vector<1x256xi32>
    %c0_i32_34 = arith.constant 0 : i32
    %55 = vector.broadcast %c0_i32_34 : i32 to vector<1x256xi32>
    %56 = arith.cmpi ne, %54, %55 : vector<1x256xi32>
    %cst_35 = arith.constant 0.000000e+00 : f32
    %57 = vector.shape_cast %56 : vector<1x256xi1> to vector<1x256xi1>
    %58 = vector.broadcast %57 : vector<1x256xi1> to vector<2x256xi1>
    %59 = vector.broadcast %cst_35 : f32 to vector<2x256xf32>
    %60 = arith.select %58, %53, %59 : vector<2x256xi1>, vector<2x256xf32>
    %c0_36 = arith.constant 0 : index
    %c0_37 = arith.constant 0 : index
    %c1024_38 = arith.constant 1024 : index
    %61 = vector.load %arg5[%c0_36, %c0_37, %c1024_38] : memref<1x2x2304xf32, #tpu.memory_space<vmem>>, vector<1x2x256xf32>
    %62 = vector.shape_cast %61 : vector<1x2x256xf32> to vector<2x256xf32>
    %63 = vector.shape_cast %60 : vector<2x256xf32> to vector<1x2x256xf32>
    tpu.vector_store %arg5[%c0_36, %c0_37, %c1024_38], %63 {strides = array<i32>} : memref<1x2x2304xf32, #tpu.memory_space<vmem>>, vector<1x2x256xf32>,
    %c0_39 = arith.constant 0 : index
    %c0_40 = arith.constant 0 : index
    %c1280 = arith.constant 1280 : index
    %64 = vector.load %arg4[%c0_39, %c0_40, %c1280] : memref<1x2x2304xf32, #tpu.memory_space<vmem>>, vector<1x2x256xf32>
    %65 = vector.shape_cast %64 : vector<1x2x256xf32> to vector<2x256xf32>
    %c255_i32 = arith.constant 255 : i32
    %66 = tpu.dynamic_rotate %65 by %c255_i32 dim 1 : vector<2x256xf32>, i32 -> vector<2x256xf32>
    %c5 = arith.constant 5 : index
    %c0_41 = arith.constant 0 : index
    %67 = vector.load %arg3[%c5, %c0_41] : memref<9x256xi32, #tpu.memory_space<vmem>>, vector<1x256xi32>
    %c0_i32_42 = arith.constant 0 : i32
    %68 = vector.broadcast %c0_i32_42 : i32 to vector<1x256xi32>
    %69 = arith.cmpi ne, %67, %68 : vector<1x256xi32>
    %cst_43 = arith.constant 0.000000e+00 : f32
    %70 = vector.shape_cast %69 : vector<1x256xi1> to vector<1x256xi1>
    %71 = vector.broadcast %70 : vector<1x256xi1> to vector<2x256xi1>
    %72 = vector.broadcast %cst_43 : f32 to vector<2x256xf32>
    %73 = arith.select %71, %66, %72 : vector<2x256xi1>, vector<2x256xf32>
    %c0_44 = arith.constant 0 : index
    %c0_45 = arith.constant 0 : index
    %c1280_46 = arith.constant 1280 : index
    %74 = vector.load %arg5[%c0_44, %c0_45, %c1280_46] : memref<1x2x2304xf32, #tpu.memory_space<vmem>>, vector<1x2x256xf32>
    %75 = vector.shape_cast %74 : vector<1x2x256xf32> to vector<2x256xf32>
    %76 = vector.shape_cast %73 : vector<2x256xf32> to vector<1x2x256xf32>
    tpu.vector_store %arg5[%c0_44, %c0_45, %c1280_46], %76 {strides = array<i32>} : memref<1x2x2304xf32, #tpu.memory_space<vmem>>, vector<1x2x256xf32>,
    %c0_47 = arith.constant 0 : index
    %c0_48 = arith.constant 0 : index
    %c1536 = arith.constant 1536 : index
    %77 = vector.load %arg4[%c0_47, %c0_48, %c1536] : memref<1x2x2304xf32, #tpu.memory_space<vmem>>, vector<1x2x256xf32>
    %78 = vector.shape_cast %77 : vector<1x2x256xf32> to vector<2x256xf32>
    %c241_i32 = arith.constant 241 : i32
    %79 = tpu.dynamic_rotate %78 by %c241_i32 dim 1 : vector<2x256xf32>, i32 -> vector<2x256xf32>
    %c6 = arith.constant 6 : index
    %c0_49 = arith.constant 0 : index
    %80 = vector.load %arg3[%c6, %c0_49] : memref<9x256xi32, #tpu.memory_space<vmem>>, vector<1x256xi32>
    %c0_i32_50 = arith.constant 0 : i32
    %81 = vector.broadcast %c0_i32_50 : i32 to vector<1x256xi32>
    %82 = arith.cmpi ne, %80, %81 : vector<1x256xi32>
    %cst_51 = arith.constant 0.000000e+00 : f32
    %83 = vector.shape_cast %82 : vector<1x256xi1> to vector<1x256xi1>
    %84 = vector.broadcast %83 : vector<1x256xi1> to vector<2x256xi1>
    %85 = vector.broadcast %cst_51 : f32 to vector<2x256xf32>
    %86 = arith.select %84, %79, %85 : vector<2x256xi1>, vector<2x256xf32>
    %c0_52 = arith.constant 0 : index
    %c0_53 = arith.constant 0 : index
    %c1536_54 = arith.constant 1536 : index
    %87 = vector.load %arg5[%c0_52, %c0_53, %c1536_54] : memref<1x2x2304xf32, #tpu.memory_space<vmem>>, vector<1x2x256xf32>
    %88 = vector.shape_cast %87 : vector<1x2x256xf32> to vector<2x256xf32>
    %89 = vector.shape_cast %86 : vector<2x256xf32> to vector<1x2x256xf32>
    tpu.vector_store %arg5[%c0_52, %c0_53, %c1536_54], %89 {strides = array<i32>} : memref<1x2x2304xf32, #tpu.memory_space<vmem>>, vector<1x2x256xf32>,
    %c0_55 = arith.constant 0 : index
    %c0_56 = arith.constant 0 : index
    %c1792 = arith.constant 1792 : index
    %90 = vector.load %arg4[%c0_55, %c0_56, %c1792] : memref<1x2x2304xf32, #tpu.memory_space<vmem>>, vector<1x2x256xf32>
    %91 = vector.shape_cast %90 : vector<1x2x256xf32> to vector<2x256xf32>
    %c240_i32 = arith.constant 240 : i32
    %92 = tpu.dynamic_rotate %91 by %c240_i32 dim 1 : vector<2x256xf32>, i32 -> vector<2x256xf32>
    %c7 = arith.constant 7 : index
    %c0_57 = arith.constant 0 : index
    %93 = vector.load %arg3[%c7, %c0_57] : memref<9x256xi32, #tpu.memory_space<vmem>>, vector<1x256xi32>
    %c0_i32_58 = arith.constant 0 : i32
    %94 = vector.broadcast %c0_i32_58 : i32 to vector<1x256xi32>
    %95 = arith.cmpi ne, %93, %94 : vector<1x256xi32>
    %cst_59 = arith.constant 0.000000e+00 : f32
    %96 = vector.shape_cast %95 : vector<1x256xi1> to vector<1x256xi1>
    %97 = vector.broadcast %96 : vector<1x256xi1> to vector<2x256xi1>
    %98 = vector.broadcast %cst_59 : f32 to vector<2x256xf32>
    %99 = arith.select %97, %92, %98 : vector<2x256xi1>, vector<2x256xf32>
    %c0_60 = arith.constant 0 : index
    %c0_61 = arith.constant 0 : index
    %c1792_62 = arith.constant 1792 : index
    %100 = vector.load %arg5[%c0_60, %c0_61, %c1792_62] : memref<1x2x2304xf32, #tpu.memory_space<vmem>>, vector<1x2x256xf32>
    %101 = vector.shape_cast %100 : vector<1x2x256xf32> to vector<2x256xf32>
    %102 = vector.shape_cast %99 : vector<2x256xf32> to vector<1x2x256xf32>
    tpu.vector_store %arg5[%c0_60, %c0_61, %c1792_62], %102 {strides = array<i32>} : memref<1x2x2304xf32, #tpu.memory_space<vmem>>, vector<1x2x256xf32>,
    %c0_63 = arith.constant 0 : index
    %c0_64 = arith.constant 0 : index
    %c2048 = arith.constant 2048 : index
    %103 = vector.load %arg4[%c0_63, %c0_64, %c2048] : memref<1x2x2304xf32, #tpu.memory_space<vmem>>, vector<1x2x256xf32>
    %104 = vector.shape_cast %103 : vector<1x2x256xf32> to vector<2x256xf32>
    %c239_i32 = arith.constant 239 : i32
    %105 = tpu.dynamic_rotate %104 by %c239_i32 dim 1 : vector<2x256xf32>, i32 -> vector<2x256xf32>
    %c8 = arith.constant 8 : index
    %c0_65 = arith.constant 0 : index
    %106 = vector.load %arg3[%c8, %c0_65] : memref<9x256xi32, #tpu.memory_space<vmem>>, vector<1x256xi32>
    %c0_i32_66 = arith.constant 0 : i32
    %107 = vector.broadcast %c0_i32_66 : i32 to vector<1x256xi32>
    %108 = arith.cmpi ne, %106, %107 : vector<1x256xi32>
    %cst_67 = arith.constant 0.000000e+00 : f32
    %109 = vector.shape_cast %108 : vector<1x256xi1> to vector<1x256xi1>
    %110 = vector.broadcast %109 : vector<1x256xi1> to vector<2x256xi1>
    %111 = vector.broadcast %cst_67 : f32 to vector<2x256xf32>
    %112 = arith.select %110, %105, %111 : vector<2x256xi1>, vector<2x256xf32>
    %c0_68 = arith.constant 0 : index
    %c0_69 = arith.constant 0 : index
    %c2048_70 = arith.constant 2048 : index
    %113 = vector.load %arg5[%c0_68, %c0_69, %c2048_70] : memref<1x2x2304xf32, #tpu.memory_space<vmem>>, vector<1x2x256xf32>
    %114 = vector.shape_cast %113 : vector<1x2x256xf32> to vector<2x256xf32>
    %115 = vector.shape_cast %112 : vector<2x256xf32> to vector<1x2x256xf32>
    tpu.vector_store %arg5[%c0_68, %c0_69, %c2048_70], %115 {strides = array<i32>} : memref<1x2x2304xf32, #tpu.memory_space<vmem>>, vector<1x2x256xf32>,
    return
  }
  func.func @transform_0(%arg0: i32, %arg1: i32, %arg2: i32) -> (i32, i32) {
    %c0_i32 = arith.constant 0 : i32
    %c0_i32_0 = arith.constant 0 : i32
    %c0_i32_1 = arith.constant 0 : i32
    return %c0_i32, %c0_i32_0 : i32, i32
  }
  func.func @transform_1(%arg0: i32, %arg1: i32, %arg2: i32) -> (i32, i32, i32) {
    %c0_i32 = arith.constant 0 : i32
    %c0_i32_0 = arith.constant 0 : i32
    return %arg0, %arg1, %c0_i32 : i32, i32, i32
  }
  func.func @transform_2(%arg0: i32, %arg1: i32, %arg2: i32) -> (i32, i32, i32) {
    %c0_i32 = arith.constant 0 : i32
    %c0_i32_0 = arith.constant 0 : i32
    return %arg0, %arg1, %c0_i32 : i32, i32, i32
  }
}

</mosaic_0001>

<llo_original>
// kernel: tpu_custom_call.1
$region0: #{tpu_custom_call.1}
  #allocation0 [shape = 'u32[]', space=smem, size = 0x4, offset = 0x4, fixed_abs, tag = 'smem constant byte address 0x4 - core index']
  #allocation1 [shape = 'u32[144,128]{1,0:T(1,128)}', space=vmem, size = 0x12000, scoped, tag = 'internal scratch']
  %s0 = inlined_call_operand.hbm [shape: s32[9,256], index: 0, kind: input, shape index: {}]
  %s1 = inlined_call_operand.hbm [shape: f32[2,2,2304], index: 1, kind: input, shape index: {}]
  %s2 = inlined_call_operand.hbm [shape: f32[2,2,2304], index: 2, kind: output, shape index: {}]
  %s3 = sld [smem:[#allocation0]]
  $region49: #{tpu_custom_call.1} parent=0
    _
  %s5 = ssub.s32 1, %s3
  %s6 = scalar_select 0, %s5, %s3
  $region1: #{tpu_custom_call.1} parent=0
    #allocation2 [shape = 'u8[16384]{0}', space=vmem, size = 0x4000, scoped, tag = 'input window, operand 0, single buffered']
    #allocation3 [shape = 's32[2]{0}', space=sflag, size = 0x8, scoped, tag = 'scoped memory for tpu_custom_call.1']
    #allocation4 [shape = 's32[2]{0}', space=sflag, size = 0x8, scoped, tag = 'scoped memory for tpu_custom_call.1']
    #allocation5 [shape = 'u8[36864]{0}', space=vmem, size = 0x9000, scoped, tag = 'input window, operand 1']
    #allocation6 [shape = 's32[2]{0}', space=sflag, size = 0x8, scoped, tag = 'scoped memory for tpu_custom_call.1']
    #allocation7 [shape = 'u8[36864]{0}', space=vmem, size = 0x9000, scoped, tag = 'output window, operand 0']
    %7 = vsyncpa [#allocation3], 0
    %8 = vsyncpa [#allocation6], 0
    %s9 = scalar_lea.sflag [#allocation6], 1
    %10 = vsyncpa %s9, 0
    %11 = vsyncpa [#allocation4], 0
    %s12 = scalar_lea.sflag [#allocation4], 1
    %13 = vsyncpa %s12, 0
    loop: start=0, step=1, limit=4
    $region2: #{tpu_custom_call.1} parent=1 // loop_pre_header
      _
    $region3: #{tpu_custom_call.1} parent=1 // loop_header
      %s15 = sphi 0, %s19
      %p16 = scmp.ge.s32.totalorder %s15, 4
      %s22 = sphi 0, %s41
      %s23 = sphi 0, %s37
      %s24 = sphi 0, %s33
      %s25 = sphi 0, %s22
      %s26 = sphi 0, %s23
      %s27 = sphi 0, %s24
      %s28 = sphi 0, %s25
      %s29 = sphi 0, %s26
      %s30 = sphi 0, %s27
      %s42 = sphi 0, %s42
      %s44 = sphi 0, %s42
      %s45 = sphi 0, %s44
      %s59 = sphi 0, %s45
      %s67 = sphi 0, %s69
      %s70 = sphi 0, %s67
      %s71 = sphi 0, %s70
      %s87 = sphi 0, %s71
      %s95 = sphi 0, %s97
      %s98 = sphi 0, %s95
      %s99 = sphi 0, %s98
      %s115 = sphi 0, %s99
    $region4: #{tpu_custom_call.1} parent=1 // loop_header_branch
      %18 = sbr.rel (%p16) target = $region8
    $region5: #{tpu_custom_call.1} parent=1 // loop_body
      %s20 = ssub.s32 %s15, 1
      %s21 = ssub.s32 %s15, 2
      %s31 = sadd.s32 1, %s24
      %p32 = scmp.ge.s32.totalorder %s31, 1
      %s33 = scalar_select %p32, 0, %s31
      %s34 = sadd.s32 1, %s23
      %s35 = scalar_select %p32, %s34, %s23
      %p36 = scmp.ge.s32.totalorder %s35, 1
      %s37 = scalar_select %p36, 0, %s35
      %s38 = sadd.s32 1, %s22
      %s39 = scalar_select %p36, %s38, %s22
      %p40 = scmp.ge.s32.totalorder %s39, 2
      %s41 = scalar_select %p40, 0, %s39
      %s43 = sadd.s32 %s42, 1
      %p46 = scmp.eq.s32.totalorder %s15, 1
      %p47 = scmp.ne.s32.totalorder %s42, %s44
      %p48 = scmp.eq.s32.totalorder %s15, 0
      %p49 = por %p47, %p48
      %p50 = scmp.ne.s32.totalorder %s42, %s44
      %p51 = scmp.eq.s32.totalorder %s20, 1
      %p52 = por %p50, %p51
      %p53 = scmp.ne.s32.totalorder %s44, %s45
      %p54 = scmp.eq.s32.totalorder %s20, 0
      %p55 = por %p53, %p54
      %p56 = scmp.ne.s32.totalorder %s44, %s45
      %p57 = scmp.eq.s32.totalorder %s21, 1
      %p58 = por %p56, %p57
      %p60 = scmp.ne.s32.totalorder %s45, %s59
      %p61 = scmp.eq.s32.totalorder %s21, 0
      %p62 = por %p60, %p61
      %s63 = ssub.s32 %s22, %s41
      %s64 = ssub.s32 %s23, %s37
      %s65 = sor.u32 %s63, %s64
      %p66 = scmp.eq.s32.totalorder %s65, 0
      %s68 = sadd.s32 %s67, 1
      %s69 = scalar_select %p66, %s67, %s68
      %p72 = pneg %p66
      %p73 = scmp.eq.s32.totalorder %s15, 1
      %p74 = por %p72, %p73
      %p75 = scmp.ne.s32.totalorder %s67, %s70
      %p76 = scmp.eq.s32.totalorder %s15, 0
      %p77 = por %p75, %p76
      %p78 = scmp.ne.s32.totalorder %s67, %s70
      %p79 = scmp.eq.s32.totalorder %s20, 1
      %p80 = por %p78, %p79
      %p81 = scmp.ne.s32.totalorder %s70, %s71
      %p82 = scmp.eq.s32.totalorder %s20, 0
      %p83 = por %p81, %p82
      %p84 = scmp.ne.s32.totalorder %s70, %s71
      %p85 = scmp.eq.s32.totalorder %s21, 1
      %p86 = por %p84, %p85
      %p88 = scmp.ne.s32.totalorder %s71, %s87
      %p89 = scmp.eq.s32.totalorder %s21, 0
      %p90 = por %p88, %p89
      %s91 = ssub.s32 %s22, %s41
      %s92 = ssub.s32 %s23, %s37
      %s93 = sor.u32 %s91, %s92
      %p94 = scmp.eq.s32.totalorder %s93, 0
      %s96 = sadd.s32 %s95, 1
      %s97 = scalar_select %p94, %s95, %s96
      %p100 = pneg %p94
      %p101 = scmp.eq.s32.totalorder %s15, 1
      %p102 = por %p100, %p101
      %p103 = scmp.ne.s32.totalorder %s95, %s98
      %p104 = scmp.eq.s32.totalorder %s15, 0
      %p105 = por %p103, %p104
      %p106 = scmp.ne.s32.totalorder %s95, %s98
      %p107 = scmp.eq.s32.totalorder %s20, 1
      %p108 = por %p106, %p107
      %p109 = scmp.ne.s32.totalorder %s98, %s99
      %p110 = scmp.eq.s32.totalorder %s20, 0
      %p111 = por %p109, %p110
      %p112 = scmp.ne.s32.totalorder %s98, %s99
      %p113 = scmp.eq.s32.totalorder %s21, 1
      %p114 = por %p112, %p113
      %p116 = scmp.ne.s32.totalorder %s99, %s115
      %p117 = scmp.eq.s32.totalorder %s21, 0
      %p118 = por %p116, %p117
      %p119 = scmp.le.s32.totalorder 1, %s15
      %p120 = scmp.lt.s32.totalorder %s15, 3
      %p121 = pnand %p119, %p120
      %p122 = pneg %p121
      // Predicated region
      $region9: #{tpu_custom_call.1} parent=5 // pred_check
        _
      $region10: #{tpu_custom_call.1} parent=5 // pred_check_branch
        %124 = sbr.rel (%p121) target = $region12
      $region11: #{tpu_custom_call.1} parent=5 // pred_region
        %s125 = ssub.s32 %s15, 1
        // Predicated region
        $region13: #{tpu_custom_call.1} parent=11 // pred_check
          %p126 = pneg %p55
        $region14: #{tpu_custom_call.1} parent=11 // pred_check_branch
          %128 = sbr.rel (%p126) target = $region16
        $region15: #{tpu_custom_call.1} parent=11 // pred_region
          %s130 = ssub.s32 512, 512
          %131 = vsyncadd [#allocation3], %s130
          %s132 = sshll.u32 [#allocation2], 4
          %s133 = int_to_ptr.vmem [resolvable:$true] %s132
          %138 = dma.hbm_to_vmem [thread:$0]  %s0, 512, %s133, [#allocation3], 256, 256, 16
        $region16: #{tpu_custom_call.1} parent=11 // pred_fallthru
          _
      $region12: #{tpu_custom_call.1} parent=5 // pred_fallthru
        _
      %p139 = scmp.lt.s32.totalorder %s15, 2
      // Predicated region
      $region17: #{tpu_custom_call.1} parent=5 // pred_check
        %p140 = pneg %p139
      $region18: #{tpu_custom_call.1} parent=5 // pred_check_branch
        %142 = sbr.rel (%p140) target = $region20
      $region19: #{tpu_custom_call.1} parent=5 // pred_region
        // Predicated region
        $region21: #{tpu_custom_call.1} parent=19 // pred_check
          %p143 = pneg %p77
        $region22: #{tpu_custom_call.1} parent=19 // pred_check_branch
          %145 = sbr.rel (%p143) target = $region24
        $region23: #{tpu_custom_call.1} parent=19 // pred_region
          %s146 = sand.u32 %s67, 1
          %s147 = scalar_lea.sflag [#allocation6], %s146
          %s148 = sand.u32 %s67, 1
          %s149 = smul.addr %s148, 36
          %s150 = scalar_lea.vmem [#allocation5], %s149
          %s152 = ssub.s32 576, 576
          %153 = vsyncadd %s147, %s152
          %s154 = smul.addr %s23, 18
          %s155 = smul.addr %s22, 18
          %s156 = sadd.s32 %s154, %s155
          %s157 = smul.addr %s156, 32
          %s158 = scalar_lea.hbm %s1, %s157
          %s160 = sshll.u32 %s150, 4
          %s161 = int_to_ptr.vmem [resolvable:$true] %s160
          %163 = dma.hbm_to_vmem [thread:$0]  %s158, 576, %s161, %s147
        $region24: #{tpu_custom_call.1} parent=19 // pred_fallthru
          _
      $region20: #{tpu_custom_call.1} parent=5 // pred_fallthru
        _
      %p164 = scmp.le.s32.totalorder 1, %s15
      %p165 = scmp.lt.s32.totalorder %s15, 3
      %p166 = pnand %p164, %p165
      %p167 = pneg %p166
      // Predicated region
      $region25: #{tpu_custom_call.1} parent=5 // pred_check
        _
      $region26: #{tpu_custom_call.1} parent=5 // pred_check_branch
        %169 = sbr.rel (%p166) target = $region28
      $region27: #{tpu_custom_call.1} parent=5 // pred_region
        %s170 = ssub.s32 %s15, 1
        // Predicated region
        $region29: #{tpu_custom_call.1} parent=27 // pred_check
          %p171 = pneg %p55
        $region30: #{tpu_custom_call.1} parent=27 // pred_check_branch
          %173 = sbr.rel (%p171) target = $region32
        $region31: #{tpu_custom_call.1} parent=27 // pred_region
          %174 = dma.done [#allocation3], 512
        $region32: #{tpu_custom_call.1} parent=27 // pred_fallthru
          _
        %s175 = sand.u32 %s70, 1
        %s176 = scalar_lea.sflag [#allocation6], %s175
        %s177 = sand.u32 %s70, 1
        %s178 = smul.addr %s177, 36
        %s179 = scalar_lea.vmem [#allocation5], %s178
        // Predicated region
        $region33: #{tpu_custom_call.1} parent=27 // pred_check
          %p180 = pneg %p83
        $region34: #{tpu_custom_call.1} parent=27 // pred_check_branch
          %182 = sbr.rel (%p180) target = $region36
        $region35: #{tpu_custom_call.1} parent=27 // pred_region
          %183 = dma.done %s176, 576
        $region36: #{tpu_custom_call.1} parent=27 // pred_fallthru
          _
        %p184 = pneg %p55
        %p185 = pneg %p52
        %s186 = sand.u32 %s70, 1
        %s187 = scalar_lea.sflag [#allocation6], %s186
        %s188 = sand.u32 %s70, 1
        %s189 = smul.addr %s188, 36
        %s190 = scalar_lea.vmem [#allocation5], %s189
        %p191 = pneg %p83
        %p192 = pneg %p80
        %p193 = pneg %p111
        %p194 = pneg %p108
        %s195 = sand.u32 %s98, 1
        %s196 = scalar_lea.sflag [#allocation4], %s195
        %s197 = sand.u32 %s98, 1
        %s198 = smul.addr %s197, 36
        %s199 = scalar_lea.vmem [#allocation7], %s198
        %v200 = vld [vmem:[%s179] sm:$0xf]
        %v203 = vunpack.c.l.s4 1983009808
        %v204 = vunpack.c.0.s8 %v203
        %v205 = vlaneseq
        %v206 = vshrl.u32 %v205, 7
        %v207 = vsub.s32 %v204, %v206
        %v208 = vrot.slane %v200, %v207
        %v209 = vcombine.high %v208, %v208
        %212 = vrot.lane.b32.xlu0 %v208, 17
        %v213 = vpop.permute.xlu0 %212
        %214 = vrot.lane.b32.xlu0 %v209, 17
        %v215 = vpop.permute.xlu0 %214
        %v216 = vlaneseq
        %v217 = vand.u32 %v216, 127
        %vm218 = vcmp.lt.s32.totalorder %v217, 17
        %v219 = vsel %vm218, %v213, %v215
        %v220 = vsel %vm218, %v215, %v213
        %v221 = vld [vmem:[#allocation2] ss:$8 sm:$0x3]
        %vm222 = vcmp.ne.s32.totalorder %v221, 0
        %v223 = vsel %vm222, 1, 0
        %v224 = vlaneseq
        %v225 = vshrl.u32 %v224, 7
        %v226 = vsub.s32 0, %v225
        %v227 = vrot.slane %v223, %v226
        %v228 = vlaneseq
        %v229 = vshrl.u32 %v228, 7
        %v230 = vsub.s32 1, %v229
        %v231 = vrot.slane %v223, %v230
        %vm232 = vcmp.eq.s32.totalorder %v227, 1
        %vm233 = vcmp.eq.s32.totalorder %v231, 1
        %v234 = vsel %vm232, %v220, 0.0
        %v235 = vsel %vm233, %v219, 0.0
        %v238 = vcombine.low %v234, %v235
        %v240 = vunpack.c.l.s4 1983009808
        %v241 = vunpack.c.0.s8 %v240
        %v242 = vlaneseq
        %v243 = vshrl.u32 %v242, 7
        %v244 = vsub.s32 %v241, %v243
        %v245 = vrot.slane %v238, %v244
        %247 = vst [vmem:[%s199] sm:$0xf] %v245
        %v248 = vld [vmem:[%s179 + $0x4] sm:$0xf]
        %v251 = vunpack.c.l.s4 1983009808
        %v252 = vunpack.c.0.s8 %v251
        %v253 = vlaneseq
        %v254 = vshrl.u32 %v253, 7
        %v255 = vsub.s32 %v252, %v254
        %v256 = vrot.slane %v248, %v255
        %v257 = vcombine.high %v256, %v256
        %260 = vrot.lane.b32.xlu0 %v256, 16
        %v261 = vpop.permute.xlu0 %260
        %262 = vrot.lane.b32.xlu0 %v257, 16
        %v263 = vpop.permute.xlu0 %262
        %vm264 = vcmp.lt.s32.totalorder %v217, 16
        %v265 = vsel %vm264, %v261, %v263
        %v266 = vsel %vm264, %v263, %v261
        %s267 = scalar_lea.vmem [#allocation2], 1
        %v268 = vld [vmem:[%s267] ss:$8 sm:$0x3]
        %vm269 = vcmp.ne.s32.totalorder %v268, 0
        %v270 = vsel %vm269, 1, 0
        %v271 = vlaneseq
        %v272 = vshrl.u32 %v271, 7
        %v273 = vsub.s32 0, %v272
        %v274 = vrot.slane %v270, %v273
        %v275 = vlaneseq
        %v276 = vshrl.u32 %v275, 7
        %v277 = vsub.s32 1, %v276
        %v278 = vrot.slane %v270, %v277
        %vm279 = vcmp.eq.s32.totalorder %v274, 1
        %vm280 = vcmp.eq.s32.totalorder %v278, 1
        %v281 = vsel %vm279, %v266, 0.0
        %v282 = vsel %vm280, %v265, 0.0
        %v285 = vcombine.low %v281, %v282
        %v287 = vunpack.c.l.s4 1983009808
        %v288 = vunpack.c.0.s8 %v287
        %v289 = vlaneseq
        %v290 = vshrl.u32 %v289, 7
        %v291 = vsub.s32 %v288, %v290
        %v292 = vrot.slane %v285, %v291
        %294 = vst [vmem:[%s199 + $0x4] sm:$0xf] %v292
        %v295 = vld [vmem:[%s179 + $0x8] sm:$0xf]
        %v298 = vunpack.c.l.s4 1983009808
        %v299 = vunpack.c.0.s8 %v298
        %v300 = vlaneseq
        %v301 = vshrl.u32 %v300, 7
        %v302 = vsub.s32 %v299, %v301
        %v303 = vrot.slane %v295, %v302
        %v304 = vcombine.high %v303, %v303
        %307 = vrot.lane.b32.xlu0 %v303, 15
        %v308 = vpop.permute.xlu0 %307
        %309 = vrot.lane.b32.xlu0 %v304, 15
        %v310 = vpop.permute.xlu0 %309
        %vm311 = vcmp.lt.s32.totalorder %v217, 15
        %v312 = vsel %vm311, %v308, %v310
        %v313 = vsel %vm311, %v310, %v308
        %s314 = scalar_lea.vmem [#allocation2], 2
        %v315 = vld [vmem:[%s314] ss:$8 sm:$0x3]
        %vm316 = vcmp.ne.s32.totalorder %v315, 0
        %v317 = vsel %vm316, 1, 0
        %v318 = vlaneseq
        %v319 = vshrl.u32 %v318, 7
        %v320 = vsub.s32 0, %v319
        %v321 = vrot.slane %v317, %v320
        %v322 = vlaneseq
        %v323 = vshrl.u32 %v322, 7
        %v324 = vsub.s32 1, %v323
        %v325 = vrot.slane %v317, %v324
        %vm326 = vcmp.eq.s32.totalorder %v321, 1
        %vm327 = vcmp.eq.s32.totalorder %v325, 1
        %v328 = vsel %vm326, %v313, 0.0
        %v329 = vsel %vm327, %v312, 0.0
        %v332 = vcombine.low %v328, %v329
        %v334 = vunpack.c.l.s4 1983009808
        %v335 = vunpack.c.0.s8 %v334
        %v336 = vlaneseq
        %v337 = vshrl.u32 %v336, 7
        %v338 = vsub.s32 %v335, %v337
        %v339 = vrot.slane %v332, %v338
        %341 = vst [vmem:[%s199 + $0x8] sm:$0xf] %v339
        %v342 = vld [vmem:[%s179 + $0xc] sm:$0xf]
        %v345 = vunpack.c.l.s4 1983009808
        %v346 = vunpack.c.0.s8 %v345
        %v347 = vlaneseq
        %v348 = vshrl.u32 %v347, 7
        %v349 = vsub.s32 %v346, %v348
        %v350 = vrot.slane %v342, %v349
        %v351 = vcombine.high %v350, %v350
        %354 = vrot.lane.b32.xlu0 %v350, 1
        %v355 = vpop.permute.xlu0 %354
        %356 = vrot.lane.b32.xlu0 %v351, 1
        %v357 = vpop.permute.xlu0 %356
        %vm358 = vcmp.lt.s32.totalorder %v217, 1
        %v359 = vsel %vm358, %v355, %v357
        %v360 = vsel %vm358, %v357, %v355
        %s361 = scalar_lea.vmem [#allocation2], 3
        %v362 = vld [vmem:[%s361] ss:$8 sm:$0x3]
        %vm363 = vcmp.ne.s32.totalorder %v362, 0
        %v364 = vsel %vm363, 1, 0
        %v365 = vlaneseq
        %v366 = vshrl.u32 %v365, 7
        %v367 = vsub.s32 0, %v366
        %v368 = vrot.slane %v364, %v367
        %v369 = vlaneseq
        %v370 = vshrl.u32 %v369, 7
        %v371 = vsub.s32 1, %v370
        %v372 = vrot.slane %v364, %v371
        %vm373 = vcmp.eq.s32.totalorder %v368, 1
        %vm374 = vcmp.eq.s32.totalorder %v372, 1
        %v375 = vsel %vm373, %v360, 0.0
        %v376 = vsel %vm374, %v359, 0.0
        %v379 = vcombine.low %v375, %v376
        %v381 = vunpack.c.l.s4 1983009808
        %v382 = vunpack.c.0.s8 %v381
        %v383 = vlaneseq
        %v384 = vshrl.u32 %v383, 7
        %v385 = vsub.s32 %v382, %v384
        %v386 = vrot.slane %v379, %v385
        %388 = vst [vmem:[%s199 + $0xc] sm:$0xf] %v386
        %v389 = vld [vmem:[%s179 + $0x10] sm:$0xf]
        %s390 = scalar_lea.vmem [#allocation2], 4
        %v391 = vld [vmem:[%s390] ss:$8 sm:$0x3]
        %vm392 = vcmp.ne.s32.totalorder %v391, 0
        %v393 = vsel %vm392, 1, 0
        %v394 = vlaneseq
        %v395 = vshrl.u32 %v394, 7
        %v396 = vsub.s32 0, %v395
        %v397 = vrot.slane %v393, %v396
        %v398 = vlaneseq
        %v399 = vshrl.u32 %v398, 7
        %v400 = vsub.s32 1, %v399
        %v401 = vrot.slane %v393, %v400
        %vm402 = vcmp.eq.s32.totalorder %v397, 1
        %vm403 = vcmp.eq.s32.totalorder %v401, 1
        %v406 = vunpack.c.l.s4 1983009808
        %v407 = vunpack.c.0.s8 %v406
        %v408 = vlaneseq
        %v409 = vshrl.u32 %v408, 7
        %v410 = vsub.s32 %v407, %v409
        %v411 = vrot.slane %v389, %v410
        %v412 = vcombine.high %v411, %v411
        %v415 = vsel %vm402, %v411, 0.0
        %v416 = vsel %vm403, %v412, 0.0
        %v419 = vcombine.low %v415, %v416
        %v421 = vunpack.c.l.s4 1983009808
        %v422 = vunpack.c.0.s8 %v421
        %v423 = vlaneseq
        %v424 = vshrl.u32 %v423, 7
        %v425 = vsub.s32 %v422, %v424
        %v426 = vrot.slane %v419, %v425
        %428 = vst [vmem:[%s199 + $0x10] sm:$0xf] %v426
        %v429 = vld [vmem:[%s179 + $0x14] sm:$0xf]
        %v432 = vunpack.c.l.s4 1983009808
        %v433 = vunpack.c.0.s8 %v432
        %v434 = vlaneseq
        %v435 = vshrl.u32 %v434, 7
        %v436 = vsub.s32 %v433, %v435
        %v437 = vrot.slane %v429, %v436
        %v438 = vcombine.high %v437, %v437
        %441 = vrot.lane.b32.xlu0 %v437, 127
        %v442 = vpop.permute.xlu0 %441
        %443 = vrot.lane.b32.xlu0 %v438, 127
        %v444 = vpop.permute.xlu0 %443
        %vm445 = vcmp.lt.s32.totalorder %v217, 127
        %v446 = vsel %vm445, %v442, %v444
        %v447 = vsel %vm445, %v444, %v442
        %s448 = scalar_lea.vmem [#allocation2], 5
        %v449 = vld [vmem:[%s448] ss:$8 sm:$0x3]
        %vm450 = vcmp.ne.s32.totalorder %v449, 0
        %v451 = vsel %vm450, 1, 0
        %v452 = vlaneseq
        %v453 = vshrl.u32 %v452, 7
        %v454 = vsub.s32 0, %v453
        %v455 = vrot.slane %v451, %v454
        %v456 = vlaneseq
        %v457 = vshrl.u32 %v456, 7
        %v458 = vsub.s32 1, %v457
        %v459 = vrot.slane %v451, %v458
        %vm460 = vcmp.eq.s32.totalorder %v455, 1
        %vm461 = vcmp.eq.s32.totalorder %v459, 1
        %v462 = vsel %vm460, %v446, 0.0
        %v463 = vsel %vm461, %v447, 0.0
        %v466 = vcombine.low %v462, %v463
        %v468 = vunpack.c.l.s4 1983009808
        %v469 = vunpack.c.0.s8 %v468
        %v470 = vlaneseq
        %v471 = vshrl.u32 %v470, 7
        %v472 = vsub.s32 %v469, %v471
        %v473 = vrot.slane %v466, %v472
        %475 = vst [vmem:[%s199 + $0x14] sm:$0xf] %v473
        %v476 = vld [vmem:[%s179 + $0x18] sm:$0xf]
        %v479 = vunpack.c.l.s4 1983009808
        %v480 = vunpack.c.0.s8 %v479
        %v481 = vlaneseq
        %v482 = vshrl.u32 %v481, 7
        %v483 = vsub.s32 %v480, %v482
        %v484 = vrot.slane %v476, %v483
        %v485 = vcombine.high %v484, %v484
        %488 = vrot.lane.b32.xlu0 %v484, 113
        %v489 = vpop.permute.xlu0 %488
        %490 = vrot.lane.b32.xlu0 %v485, 113
        %v491 = vpop.permute.xlu0 %490
        %vm492 = vcmp.lt.s32.totalorder %v217, 113
        %v493 = vsel %vm492, %v489, %v491
        %v494 = vsel %vm492, %v491, %v489
        %s495 = scalar_lea.vmem [#allocation2], 6
        %v496 = vld [vmem:[%s495] ss:$8 sm:$0x3]
        %vm497 = vcmp.ne.s32.totalorder %v496, 0
        %v498 = vsel %vm497, 1, 0
        %v499 = vlaneseq
        %v500 = vshrl.u32 %v499, 7
        %v501 = vsub.s32 0, %v500
        %v502 = vrot.slane %v498, %v501
        %v503 = vlaneseq
        %v504 = vshrl.u32 %v503, 7
        %v505 = vsub.s32 1, %v504
        %v506 = vrot.slane %v498, %v505
        %vm507 = vcmp.eq.s32.totalorder %v502, 1
        %vm508 = vcmp.eq.s32.totalorder %v506, 1
        %v509 = vsel %vm507, %v493, 0.0
        %v510 = vsel %vm508, %v494, 0.0
        %v513 = vcombine.low %v509, %v510
        %v515 = vunpack.c.l.s4 1983009808
        %v516 = vunpack.c.0.s8 %v515
        %v517 = vlaneseq
        %v518 = vshrl.u32 %v517, 7
        %v519 = vsub.s32 %v516, %v518
        %v520 = vrot.slane %v513, %v519
        %522 = vst [vmem:[%s199 + $0x18] sm:$0xf] %v520
        %v523 = vld [vmem:[%s179 + $0x1c] sm:$0xf]
        %v526 = vunpack.c.l.s4 1983009808
        %v527 = vunpack.c.0.s8 %v526
        %v528 = vlaneseq
        %v529 = vshrl.u32 %v528, 7
        %v530 = vsub.s32 %v527, %v529
        %v531 = vrot.slane %v523, %v530
        %v532 = vcombine.high %v531, %v531
        %535 = vrot.lane.b32.xlu0 %v531, 112
        %v536 = vpop.permute.xlu0 %535
        %537 = vrot.lane.b32.xlu0 %v532, 112
        %v538 = vpop.permute.xlu0 %537
        %vm539 = vcmp.lt.s32.totalorder %v217, 112
        %v540 = vsel %vm539, %v536, %v538
        %v541 = vsel %vm539, %v538, %v536
        %s542 = scalar_lea.vmem [#allocation2], 7
        %v543 = vld [vmem:[%s542] ss:$8 sm:$0x3]
        %vm544 = vcmp.ne.s32.totalorder %v543, 0
        %v545 = vsel %vm544, 1, 0
        %v546 = vlaneseq
        %v547 = vshrl.u32 %v546, 7
        %v548 = vsub.s32 0, %v547
        %v549 = vrot.slane %v545, %v548
        %v550 = vlaneseq
        %v551 = vshrl.u32 %v550, 7
        %v552 = vsub.s32 1, %v551
        %v553 = vrot.slane %v545, %v552
        %vm554 = vcmp.eq.s32.totalorder %v549, 1
        %vm555 = vcmp.eq.s32.totalorder %v553, 1
        %v556 = vsel %vm554, %v540, 0.0
        %v557 = vsel %vm555, %v541, 0.0
        %v560 = vcombine.low %v556, %v557
        %v562 = vunpack.c.l.s4 1983009808
        %v563 = vunpack.c.0.s8 %v562
        %v564 = vlaneseq
        %v565 = vshrl.u32 %v564, 7
        %v566 = vsub.s32 %v563, %v565
        %v567 = vrot.slane %v560, %v566
        %569 = vst [vmem:[%s199 + $0x1c] sm:$0xf] %v567
        %v570 = vld [vmem:[%s179 + $0x20] sm:$0xf]
        %v573 = vunpack.c.l.s4 1983009808
        %v574 = vunpack.c.0.s8 %v573
        %v575 = vlaneseq
        %v576 = vshrl.u32 %v575, 7
        %v577 = vsub.s32 %v574, %v576
        %v578 = vrot.slane %v570, %v577
        %v579 = vcombine.high %v578, %v578
        %582 = vrot.lane.b32.xlu0 %v578, 111
        %v583 = vpop.permute.xlu0 %582
        %584 = vrot.lane.b32.xlu0 %v579, 111
        %v585 = vpop.permute.xlu0 %584
        %vm586 = vcmp.lt.s32.totalorder %v217, 111
        %v587 = vsel %vm586, %v583, %v585
        %v588 = vsel %vm586, %v585, %v583
        %s589 = scalar_lea.vmem [#allocation2], 16
        %v590 = vld [vmem:[%s589] ss:$8 sm:$0x3]
        %vm591 = vcmp.ne.s32.totalorder %v590, 0
        %v592 = vsel %vm591, 1, 0
        %v593 = vlaneseq
        %v594 = vshrl.u32 %v593, 7
        %v595 = vsub.s32 0, %v594
        %v596 = vrot.slane %v592, %v595
        %v597 = vlaneseq
        %v598 = vshrl.u32 %v597, 7
        %v599 = vsub.s32 1, %v598
        %v600 = vrot.slane %v592, %v599
        %vm601 = vcmp.eq.s32.totalorder %v596, 1
        %vm602 = vcmp.eq.s32.totalorder %v600, 1
        %v603 = vsel %vm601, %v587, 0.0
        %v604 = vsel %vm602, %v588, 0.0
        %v607 = vcombine.low %v603, %v604
        %v609 = vunpack.c.l.s4 1983009808
        %v610 = vunpack.c.0.s8 %v609
        %v611 = vlaneseq
        %v612 = vshrl.u32 %v611, 7
        %v613 = vsub.s32 %v610, %v612
        %v614 = vrot.slane %v607, %v613
        %616 = vst [vmem:[%s199 + $0x20] sm:$0xf] %v614
        %s617 = sand.u32 %s98, 1
        %s618 = scalar_lea.sflag [#allocation4], %s617
        %s619 = sand.u32 %s98, 1
        %s620 = smul.addr %s619, 36
        %s621 = scalar_lea.vmem [#allocation7], %s620
        // Predicated region
        $region37: #{tpu_custom_call.1} parent=27 // pred_check
          %p622 = pneg %p108
        $region38: #{tpu_custom_call.1} parent=27 // pred_check_branch
          %624 = sbr.rel (%p622) target = $region40
        $region39: #{tpu_custom_call.1} parent=27 // pred_region
          %s626 = ssub.s32 576, 576
          %627 = vsyncadd %s618, %s626
          %s628 = smul.addr %s26, 18
          %s629 = smul.addr %s25, 18
          %s630 = sadd.s32 %s628, %s629
          %s631 = smul.addr %s630, 32
          %s632 = scalar_lea.hbm %s2, %s631
          %s634 = sshll.u32 %s621, 4
          %s635 = int_to_ptr.vmem [resolvable:$true] %s634
          %637 = dma.vmem_to_hbm [thread:$0]  %s635, 576, %s632, %s618
        $region40: #{tpu_custom_call.1} parent=27 // pred_fallthru
          _
      $region28: #{tpu_custom_call.1} parent=5 // pred_fallthru
        _
      %p638 = scmp.le.s32.totalorder 2, %s15
      // Predicated region
      $region41: #{tpu_custom_call.1} parent=5 // pred_check
        %p639 = pneg %p638
      $region42: #{tpu_custom_call.1} parent=5 // pred_check_branch
        %641 = sbr.rel (%p639) target = $region44
      $region43: #{tpu_custom_call.1} parent=5 // pred_region
        %s642 = ssub.s32 %s15, 2
        // Predicated region
        $region45: #{tpu_custom_call.1} parent=43 // pred_check
          %p643 = pneg %p114
        $region46: #{tpu_custom_call.1} parent=43 // pred_check_branch
          %645 = sbr.rel (%p643) target = $region48
        $region47: #{tpu_custom_call.1} parent=43 // pred_region
          %s646 = sand.u32 %s99, 1
          %s647 = scalar_lea.sflag [#allocation4], %s646
          %s648 = sand.u32 %s99, 1
          %s649 = smul.addr %s648, 36
          %s650 = scalar_lea.vmem [#allocation7], %s649
          %651 = dma.done %s647, 576
        $region48: #{tpu_custom_call.1} parent=43 // pred_fallthru
          _
      $region44: #{tpu_custom_call.1} parent=5 // pred_fallthru
        _
    $region6: #{tpu_custom_call.1} parent=1 // loop_footer
      %s19 = sadd.s32 1, %s15
    $region7: #{tpu_custom_call.1} parent=1 // loop_footer_branch
      %14 = sbr.rel target = $region3
    $region8: #{tpu_custom_call.1} parent=1 // loop_exit
      _
    %652 = vsyncpa [#allocation3], 1
    %s653 = scalar_lea.sflag [#allocation3], 1
    %654 = vsyncpa %s653, 1
    %655 = vsyncpa [#allocation6], 1
    %s656 = scalar_lea.sflag [#allocation6], 1
    %657 = vsyncpa %s656, 1
    %658 = vsyncpa [#allocation4], 1
    %s659 = scalar_lea.sflag [#allocation4], 1
    %660 = vsyncpa %s659, 1

</llo_original>
